<compile_context>
chip_gen: v7x
topology: tpu7x:2x2x1
jax: 0.10.0
libtpu: 0.0.40
codegen_flags: <defaults>
</compile_context>

<pallas_src>
import jax
import jax.numpy as jnp
from jax import lax
from jax.experimental import pallas as pl
from jax.experimental.pallas import tpu as pltpu


def _round_up(x, m):
    return (x + m - 1) // m * m


def _fused_weights(weight, bias, c_out_pad, compute_dtype):
    """Fold x2 linear upsample (align_corners=False), conv zero-padding edge
    corrections and bias into one matmul weight.

    Returns W of shape (2*c_out_pad, 9*C_in + 1) such that  y = W @ s  with

        s = [x(m-2); x(m-1); x(m); x(m+1); x(m+2);          # clamp-ext shifts
             x0*oh(0); x0*oh(1); xL*oh(L-2); xL*oh(L-1);     # boundary rows
             ones]                                           # bias row

    Rows 0..P-1 are the even output phase, rows P..2P-1 the odd phase.
    """
    w = weight.astype(jnp.float32)
    c_out, c_in, k = w.shape
    assert k == 7, "polyphase path is specialized for kernel_size=7"
    wk = [w[:, :, i] for i in range(k)]        # each (C_out, C_in)
    a, b = 0.25, 0.75                          # upsample taps (align_corners=False)
    zero = jnp.zeros_like(wk[0])

    # Interior polyphase taps:
    #   y[2m]   = sum_d W_even[d] @ x[:, m-2+d]
    #   y[2m+1] = sum_d W_odd[d]  @ x[:, m-2+d]
    w_even = [
        b * wk[0] + a * wk[1],
        a * wk[0] + b * wk[1] + b * wk[2] + a * wk[3],
        a * wk[2] + b * wk[3] + b * wk[4] + a * wk[5],
        a * wk[4] + b * wk[5] + b * wk[6],
        a * wk[6],
    ]
    w_odd = [
        a * wk[0],
        b * wk[0] + b * wk[1] + a * wk[2],
        a * wk[1] + b * wk[2] + b * wk[3] + a * wk[4],
        a * wk[3] + b * wk[4] + b * wk[5] + a * wk[6],
        a * wk[5] + b * wk[6],
    ]

    # Conv zero-padding vs. clamp-extended shifts differ only at the first 3
    # and last 3 output samples.  Correction row groups (applied via s):
    #   A: x[:, 0]   at output column 0      B: x[:, 0]   at output column 1
    #   C: x[:, L-1] at output column L-2    D: x[:, L-1] at output column L-1
    corr_even = [-(wk[0] + wk[1] + wk[2]), -wk[0], zero, -(wk[5] + wk[6])]
    corr_odd = [-(wk[0] + wk[1]), zero, -wk[6], -(wk[4] + wk[5] + wk[6])]

    bcol = bias.astype(jnp.float32)[:, None]                   # (C_out, 1)
    w_e = jnp.concatenate(w_even + corr_even + [bcol], axis=1)  # (C_out, 9*C_in+1)
    w_o = jnp.concatenate(w_odd + corr_odd + [bcol], axis=1)
    pad = ((0, c_out_pad - c_out), (0, 0))
    w_e = jnp.pad(w_e, pad)
    w_o = jnp.pad(w_o, pad)
    return jnp.concatenate([w_e, w_o], axis=0).astype(compute_dtype)


def up_kernel(x_ref, w_ref, o_ref):
    # x_ref : (N, C_in, L)          input in VMEM
    # w_ref : (2P, 9*C_in + 1)      fused polyphase / boundary / bias weights
    # o_ref : (2P, N*L)             phase-major output (rows [0,P)=even, [P,2P)=odd)
    n_batch, c_in, length = x_ref.shape
    dt = x_ref.dtype

    # One-hot lane masks for the 4 boundary-corrected columns of a batch slab.
    lane = lax.broadcasted_iota(jnp.int32, (1, length), 1)
    oh0 = (lane == 0).astype(dt)
    oh1 = (lane == 1).astype(dt)
    oh_lm2 = (lane == length - 2).astype(dt)
    oh_lm1 = (lane == length - 1).astype(dt)
    ones_row = jnp.ones((1, length), dt)

    parts = []
    for n in range(n_batch):                    # unrolled; batch folded into lanes
        x = x_ref[n]                            # (C_in, L)
        x0 = x[:, :1]                           # (C_in, 1)
        xl = x[:, length - 1:]                  # (C_in, 1)
        # Clamp-extended shifts x(m+d), d = -2..+2 (lane shifts within the slab).
        sm2 = jnp.concatenate([x0, x0, x[:, :length - 2]], axis=1)
        sm1 = jnp.concatenate([x0, x[:, :length - 1]], axis=1)
        sp1 = jnp.concatenate([x[:, 1:], xl], axis=1)
        sp2 = jnp.concatenate([x[:, 2:], xl, xl], axis=1)
        # Boundary-correction rows: x0 / x[L-1] masked to single output lanes.
        parts.append(jnp.concatenate(
            [sm2, sm1, x, sp1, sp2,
             x0 * oh0, x0 * oh1, xl * oh_lm2, xl * oh_lm1, ones_row], axis=0))

    s = jnp.concatenate(parts, axis=1)          # (9*C_in + 1, N*L)
    o_ref[...] = jnp.dot(w_ref[...], s,
                         preferred_element_type=jnp.float32).astype(o_ref.dtype)


def up_forward(x1, x2, weight, bias):
    """Pallas equivalent of Up.forward(x1, x2).  x2 is unused (as in PyTorch)."""
    del x2                                   # the PyTorch module ignores it
    n, c_in, length = x1.shape
    c_out, c_in_w, k = weight.shape
    assert c_in_w == c_in and k == 7 and length >= 4
    p = _round_up(c_out, 8)                  # dense output sublanes

    w = _fused_weights(weight, bias, p, x1.dtype)

    out = pl.pallas_call(
        up_kernel,
        out_shape=jax.ShapeDtypeStruct((2 * p, n * length), x1.dtype),
        in_specs=[
            pl.BlockSpec(memory_space=pltpu.MemorySpace.VMEM),
            pl.BlockSpec(memory_space=pltpu.MemorySpace.VMEM),
        ],
        out_specs=pl.BlockSpec(memory_space=pltpu.MemorySpace.VMEM),
    )(x1, w)
    # TODO(synk): at real U-Net sizes, add an L-tile grid axis with a 2-column
    # halo plus a batch-parallel axis instead of one full-slab invocation, and
    # budget VMEM for v7x's 64 MiB.

    # De-interleave phases / un-flatten batch (layout plumbing outside kernel):
    #   y[b, c, 2m + phase] = out[phase*p + c, b*L + m]
    out = out.reshape(2, p, n, length)[:, :c_out]            # (2, C_out, N, L)
    return jnp.transpose(out, (2, 1, 3, 0)).reshape(n, c_out, 2 * length)


# -----------------------------------------------------------------------------
# Pure-JAX reference (correctness sanity check)
# -----------------------------------------------------------------------------
def reference(x1, weight, bias):
    x = x1.astype(jnp.float32)
    even = jnp.concatenate(
        [x[:, :, :1], 0.25 * x[:, :, :-1] + 0.75 * x[:, :, 1:]], axis=2)
    odd = jnp.concatenate(
        [0.75 * x[:, :, :-1] + 0.25 * x[:, :, 1:], x[:, :, -1:]], axis=2)
    up = jnp.stack([even, odd], axis=-1).reshape(x.shape[0], x.shape[1],
                                                 2 * x.shape[2])
    pad = (weight.shape[2] - 1) // 2
    y = lax.conv_general_dilated(
        up, weight.astype(jnp.float32),
        window_strides=(1,), padding=[(pad, pad)],
        dimension_numbers=("NCH", "OIH", "NCH"))
    return y + bias.astype(jnp.float32)[None, :, None]


if __name__ == "__main__":
    # Small shapes consistent with the module (NCW layout):
    N, C_IN, C_OUT, L, K = 2, 8, 4, 64, 7

    key = jax.random.PRNGKey(0)
    k1, k2, k3, k4 = jax.random.split(key, 4)
    x1 = jax.random.normal(k1, (N, C_IN, L), dtype=jnp.float32)
    x2 = jax.random.normal(k2, (N, C_IN, 2 * L), dtype=jnp.float32)  # unused
    weight = jax.random.normal(k3, (C_OUT, C_IN, K), dtype=jnp.float32) * 0.1
    bias = jax.random.normal(k4, (C_OUT,), dtype=jnp.float32) * 0.1

    out = jax.jit(up_forward)(x1, x2, weight, bias)
    out = jax.block_until_ready(out)

    ref = reference(x1, weight, bias)
    assert out.shape == (N, C_OUT, 2 * L), out.shape
    assert jnp.allclose(out, ref, atol=1e-4, rtol=1e-4), float(
        jnp.max(jnp.abs(out - ref)))

    print("KERNEL_OK")
</pallas_src>

<mosaic_0001>
module attributes {stable_mosaic.version = 11 : i64} {
  func.func @up_kernel(%arg0: memref<2x8x64xf32, #tpu.memory_space<vmem>>, %arg1: memref<16x73xf32, #tpu.memory_space<vmem>>, %arg2: memref<16x128xf32, #tpu.memory_space<vmem>>) attributes {dimension_semantics = [], scalar_prefetch = 0 : i64, scratch_operands = 0 : i64, tpu.core_type = #tpu.core_type<tc>} {
    %0 = tpu.iota {dimensions = array<i32: 1>} : vector<1x64xi32>
    %c0_i32 = arith.constant 0 : i32
    %1 = vector.broadcast %c0_i32 : i32 to vector<1x64xi32>
    %2 = arith.cmpi eq, %0, %1 : vector<1x64xi32>
    %3 = arith.extui %2 : vector<1x64xi1> to vector<1x64xi32>
    %4 = arith.sitofp %3 : vector<1x64xi32> to vector<1x64xf32>
    %c1_i32 = arith.constant 1 : i32
    %5 = vector.broadcast %c1_i32 : i32 to vector<1x64xi32>
    %6 = arith.cmpi eq, %0, %5 : vector<1x64xi32>
    %7 = arith.extui %6 : vector<1x64xi1> to vector<1x64xi32>
    %8 = arith.sitofp %7 : vector<1x64xi32> to vector<1x64xf32>
    %c62_i32 = arith.constant 62 : i32
    %9 = vector.broadcast %c62_i32 : i32 to vector<1x64xi32>
    %10 = arith.cmpi eq, %0, %9 : vector<1x64xi32>
    %11 = arith.extui %10 : vector<1x64xi1> to vector<1x64xi32>
    %12 = arith.sitofp %11 : vector<1x64xi32> to vector<1x64xf32>
    %c63_i32 = arith.constant 63 : i32
    %13 = vector.broadcast %c63_i32 : i32 to vector<1x64xi32>
    %14 = arith.cmpi eq, %0, %13 : vector<1x64xi32>
    %15 = arith.extui %14 : vector<1x64xi1> to vector<1x64xi32>
    %16 = arith.sitofp %15 : vector<1x64xi32> to vector<1x64xf32>
    %cst = arith.constant 1.000000e+00 : f32
    %17 = vector.broadcast %cst : f32 to vector<1x64xf32>
    %c0 = arith.constant 0 : index
    %c0_0 = arith.constant 0 : index
    %c0_1 = arith.constant 0 : index
    %18 = vector.load %arg0[%c0, %c0_0, %c0_1] : memref<2x8x64xf32, #tpu.memory_space<vmem>>, vector<1x8x64xf32>
    %19 = vector.shape_cast %18 : vector<1x8x64xf32> to vector<8x64xf32>
    %20 = vector.extract_strided_slice %19 {offsets = [0, 0], sizes = [8, 1], strides = [1, 1]} : vector<8x64xf32> to vector<8x1xf32>
    %21 = vector.extract_strided_slice %19 {offsets = [0, 63], sizes = [8, 1], strides = [1, 1]} : vector<8x64xf32> to vector<8x1xf32>
    %22 = vector.extract_strided_slice %19 {offsets = [0, 0], sizes = [8, 62], strides = [1, 1]} : vector<8x64xf32> to vector<8x62xf32>
    %23 = tpu.concatenate %20, %20, %22 in 1 : vector<8x1xf32>, vector<8x1xf32>, vector<8x62xf32> -> vector<8x64xf32>
    %24 = vector.extract_strided_slice %19 {offsets = [0, 0], sizes = [8, 63], strides = [1, 1]} : vector<8x64xf32> to vector<8x63xf32>
    %25 = tpu.concatenate %20, %24 in 1 : vector<8x1xf32>, vector<8x63xf32> -> vector<8x64xf32>
    %26 = vector.extract_strided_slice %19 {offsets = [0, 1], sizes = [8, 63], strides = [1, 1]} : vector<8x64xf32> to vector<8x63xf32>
    %27 = tpu.concatenate %26, %21 in 1 : vector<8x63xf32>, vector<8x1xf32> -> vector<8x64xf32>
    %28 = vector.extract_strided_slice %19 {offsets = [0, 2], sizes = [8, 62], strides = [1, 1]} : vector<8x64xf32> to vector<8x62xf32>
    %29 = tpu.concatenate %28, %21, %21 in 1 : vector<8x62xf32>, vector<8x1xf32>, vector<8x1xf32> -> vector<8x64xf32>
    %30 = vector.broadcast %20 : vector<8x1xf32> to vector<8x64xf32>
    %31 = vector.broadcast %4 : vector<1x64xf32> to vector<8x64xf32>
    %32 = arith.mulf %30, %31 : vector<8x64xf32>
    %33 = vector.broadcast %20 : vector<8x1xf32> to vector<8x64xf32>
    %34 = vector.broadcast %8 : vector<1x64xf32> to vector<8x64xf32>
    %35 = arith.mulf %33, %34 : vector<8x64xf32>
    %36 = vector.broadcast %21 : vector<8x1xf32> to vector<8x64xf32>
    %37 = vector.broadcast %12 : vector<1x64xf32> to vector<8x64xf32>
    %38 = arith.mulf %36, %37 : vector<8x64xf32>
    %39 = vector.broadcast %21 : vector<8x1xf32> to vector<8x64xf32>
    %40 = vector.broadcast %16 : vector<1x64xf32> to vector<8x64xf32>
    %41 = arith.mulf %39, %40 : vector<8x64xf32>
    %42 = tpu.concatenate %23, %25, %19, %27, %29, %32, %35, %38, %41, %17 in 0 : vector<8x64xf32>, vector<8x64xf32>, vector<8x64xf32>, vector<8x64xf32>, vector<8x64xf32>, vector<8x64xf32>, vector<8x64xf32>, vector<8x64xf32>, vector<8x64xf32>, vector<1x64xf32> -> vector<73x64xf32>
    %c1 = arith.constant 1 : index
    %c0_2 = arith.constant 0 : index
    %c0_3 = arith.constant 0 : index
    %43 = vector.load %arg0[%c1, %c0_2, %c0_3] : memref<2x8x64xf32, #tpu.memory_space<vmem>>, vector<1x8x64xf32>
    %44 = vector.shape_cast %43 : vector<1x8x64xf32> to vector<8x64xf32>
    %45 = vector.extract_strided_slice %44 {offsets = [0, 0], sizes = [8, 1], strides = [1, 1]} : vector<8x64xf32> to vector<8x1xf32>
    %46 = vector.extract_strided_slice %44 {offsets = [0, 63], sizes = [8, 1], strides = [1, 1]} : vector<8x64xf32> to vector<8x1xf32>
    %47 = vector.extract_strided_slice %44 {offsets = [0, 0], sizes = [8, 62], strides = [1, 1]} : vector<8x64xf32> to vector<8x62xf32>
    %48 = tpu.concatenate %45, %45, %47 in 1 : vector<8x1xf32>, vector<8x1xf32>, vector<8x62xf32> -> vector<8x64xf32>
    %49 = vector.extract_strided_slice %44 {offsets = [0, 0], sizes = [8, 63], strides = [1, 1]} : vector<8x64xf32> to vector<8x63xf32>
    %50 = tpu.concatenate %45, %49 in 1 : vector<8x1xf32>, vector<8x63xf32> -> vector<8x64xf32>
    %51 = vector.extract_strided_slice %44 {offsets = [0, 1], sizes = [8, 63], strides = [1, 1]} : vector<8x64xf32> to vector<8x63xf32>
    %52 = tpu.concatenate %51, %46 in 1 : vector<8x63xf32>, vector<8x1xf32> -> vector<8x64xf32>
    %53 = vector.extract_strided_slice %44 {offsets = [0, 2], sizes = [8, 62], strides = [1, 1]} : vector<8x64xf32> to vector<8x62xf32>
    %54 = tpu.concatenate %53, %46, %46 in 1 : vector<8x62xf32>, vector<8x1xf32>, vector<8x1xf32> -> vector<8x64xf32>
    %55 = vector.broadcast %45 : vector<8x1xf32> to vector<8x64xf32>
    %56 = vector.broadcast %4 : vector<1x64xf32> to vector<8x64xf32>
    %57 = arith.mulf %55, %56 : vector<8x64xf32>
    %58 = vector.broadcast %45 : vector<8x1xf32> to vector<8x64xf32>
    %59 = vector.broadcast %8 : vector<1x64xf32> to vector<8x64xf32>
    %60 = arith.mulf %58, %59 : vector<8x64xf32>
    %61 = vector.broadcast %46 : vector<8x1xf32> to vector<8x64xf32>
    %62 = vector.broadcast %12 : vector<1x64xf32> to vector<8x64xf32>
    %63 = arith.mulf %61, %62 : vector<8x64xf32>
    %64 = vector.broadcast %46 : vector<8x1xf32> to vector<8x64xf32>
    %65 = vector.broadcast %16 : vector<1x64xf32> to vector<8x64xf32>
    %66 = arith.mulf %64, %65 : vector<8x64xf32>
    %67 = tpu.concatenate %48, %50, %44, %52, %54, %57, %60, %63, %66, %17 in 0 : vector<8x64xf32>, vector<8x64xf32>, vector<8x64xf32>, vector<8x64xf32>, vector<8x64xf32>, vector<8x64xf32>, vector<8x64xf32>, vector<8x64xf32>, vector<8x64xf32>, vector<1x64xf32> -> vector<73x64xf32>
    %68 = tpu.concatenate %42, %67 in 1 : vector<73x64xf32>, vector<73x64xf32> -> vector<73x128xf32>
    %c0_4 = arith.constant 0 : index
    %c0_5 = arith.constant 0 : index
    %69 = vector.load %arg1[%c0_4, %c0_5] : memref<16x73xf32, #tpu.memory_space<vmem>>, vector<16x73xf32>
    %cst_6 = arith.constant dense<0.000000e+00> : vector<16x128xf32>
    %70 = tpu.matmul %69, %68, %cst_6 {dimension_numbers = #tpu.dot_dimension_numbers<[1], [0], [0], [1], [0, 0, 1, 1], [], []>} : vector<16x73xf32>, vector<73x128xf32>, vector<16x128xf32> -> vector<16x128xf32>
    %c0_7 = arith.constant 0 : index
    %c0_8 = arith.constant 0 : index
    %71 = vector.load %arg2[%c0_7, %c0_8] : memref<16x128xf32, #tpu.memory_space<vmem>>, vector<16x128xf32>
    tpu.vector_store %arg2[%c0_7, %c0_8], %70 {strides = array<i32>} : memref<16x128xf32, #tpu.memory_space<vmem>>, vector<16x128xf32>,
    return
  }
}

</mosaic_0001>

<llo_original>
// kernel: up_forward.1
$region0: #{up_forward.1}
  #allocation0 [shape = 'u32[]', space=smem, size = 0x4, offset = 0x4, fixed_abs, tag = 'smem constant byte address 0x4 - core index']
  #allocation1 [shape = 'u32[144,128]{1,0:T(1,128)}', space=vmem, size = 0x12000, scoped, tag = 'internal scratch']
  %s0 = inlined_call_operand.vmem [shape: f32[2,8,64], index: 0, kind: input, shape index: {}]
  %s1 = inlined_call_operand.vmem [shape: f32[16,73], index: 1, kind: input, shape index: {}]
  %s2 = inlined_call_operand.vmem [shape: f32[16,128], index: 2, kind: output, shape index: {}]
  %s3 = sld [smem:[#allocation0]]
  $region18: #{up_forward.1} parent=0
    _
  %s5 = ssub.s32 1, %s3
  %s6 = scalar_select 0, %s5, %s3
  // Predicated region
  $region2: #{up_forward.1} parent=0 // pred_check
    _
  $region3: #{up_forward.1} parent=0 // pred_check_branch
    %8 = sbr.rel (0) target = $region5
  $region4: #{up_forward.1} parent=0 // pred_region
    _
  $region5: #{up_forward.1} parent=0 // pred_fallthru
    _
  // Predicated region
  $region6: #{up_forward.1} parent=0 // pred_check
    _
  $region7: #{up_forward.1} parent=0 // pred_check_branch
    %10 = sbr.rel (0) target = $region9
  $region8: #{up_forward.1} parent=0 // pred_region
    _
  $region9: #{up_forward.1} parent=0 // pred_fallthru
    _
  %v11 = vlaneseq
  %v12 = vand.u32 %v11, 127
  %vm13 = vcmp.eq.s32.totalorder %v12, 0
  %v14 = vsel %vm13, 1, 0
  %v15 = vcvt.s32.f32 %v14
  %vm16 = vcmp.eq.s32.totalorder %v12, 1
  %v17 = vsel %vm16, 1, 0
  %v18 = vcvt.s32.f32 %v17
  %vm19 = vcmp.eq.s32.totalorder %v12, 62
  %v20 = vsel %vm19, 1, 0
  %v21 = vcvt.s32.f32 %v20
  %vm22 = vcmp.eq.s32.totalorder %v12, 63
  %v23 = vsel %vm22, 1, 0
  %v24 = vcvt.s32.f32 %v23
  %v25 = vld [vmem:[%s0] sm:$0xff]
  %27 = vrot.lane.b32.xlu0 %v25, 1
  %v28 = vpop.permute.xlu0 %27
  %30 = vrot.lane.b32.xlu0 %v25, 2
  %v31 = vpop.permute.xlu0 %30
  %vm33 = vcmask 7168
  %v34 = vsel %vm33, %v25, %v28
  %vm35 = vcmask 15360
  %v36 = vsel %vm35, %v34, %v31
  %37 = vrot.lane.b32.xlu0 %v25, 127
  %v38 = vpop.permute.xlu0 %37
  %vm40 = vcmask 515072
  %v41 = vsel %vm40, %v38, %v25
  %42 = vrot.lane.b32.xlu0 %v25, 126
  %v43 = vpop.permute.xlu0 %42
  %vm45 = vcmask 506880
  %v46 = vsel %vm45, %v43, %v38
  %v47 = vsel %vm40, %v46, %v25
  %48 = vset.pattern.permute.xlu0 0
  %49 = vperm.xlu0 %48, %v25
  %v50 = vpop.permute.xlu0 %49
  %v52 = vmul.f32 %v50, %v15
  %v53 = vmul.f32 %v50, %v18
  %54 = vset.pattern.permute.xlu0 63
  %55 = vperm.xlu0 %54, %v25
  %v56 = vpop.permute.xlu0 %55
  %v58 = vmul.f32 %v56, %v21
  %v59 = vmul.f32 %v56, %v24
  %s60 = scalar_lea.vmem %s0, 8
  %v61 = vld [vmem:[%s60] sm:$0xff]
  %63 = vrot.lane.b32.xlu0 %v61, 1
  %v64 = vpop.permute.xlu0 %63
  %66 = vrot.lane.b32.xlu0 %v61, 2
  %v67 = vpop.permute.xlu0 %66
  %v69 = vsel %vm33, %v61, %v64
  %v70 = vsel %vm35, %v69, %v67
  %71 = vrot.lane.b32.xlu0 %v61, 127
  %v72 = vpop.permute.xlu0 %71
  %v74 = vsel %vm40, %v72, %v61
  %75 = vrot.lane.b32.xlu0 %v61, 126
  %v76 = vpop.permute.xlu0 %75
  %v78 = vsel %vm45, %v76, %v72
  %v79 = vsel %vm40, %v78, %v61
  %80 = vset.pattern.permute.xlu0 0
  %81 = vperm.xlu0 %80, %v61
  %v82 = vpop.permute.xlu0 %81
  %v84 = vmul.f32 %v82, %v15
  %v85 = vmul.f32 %v82, %v18
  %86 = vset.pattern.permute.xlu0 63
  %87 = vperm.xlu0 %86, %v61
  %v88 = vpop.permute.xlu0 %87
  %v90 = vmul.f32 %v88, %v21
  %v91 = vmul.f32 %v88, %v24
  %101 = vrot.lane.b32.xlu0 %v70, 64
  %v102 = vpop.permute.xlu0 %101
  %103 = vrot.lane.b32.xlu0 %v69, 64
  %v104 = vpop.permute.xlu0 %103
  %105 = vrot.lane.b32.xlu0 %v61, 64
  %v106 = vpop.permute.xlu0 %105
  %107 = vrot.lane.b32.xlu0 %v74, 64
  %v108 = vpop.permute.xlu0 %107
  %109 = vrot.lane.b32.xlu0 %v79, 64
  %v110 = vpop.permute.xlu0 %109
  %111 = vrot.lane.b32.xlu0 %v84, 64
  %v112 = vpop.permute.xlu0 %111
  %113 = vrot.lane.b32.xlu0 %v85, 64
  %v114 = vpop.permute.xlu0 %113
  %115 = vrot.lane.b32.xlu0 %v90, 64
  %v116 = vpop.permute.xlu0 %115
  %117 = vrot.lane.b32.xlu0 %v91, 64
  %v118 = vpop.permute.xlu0 %117
  %119 = vrot.lane.b32.xlu0 1.0, 64
  %v120 = vpop.permute.xlu0 %119
  %vm131 = vcmask 523264
  %v132 = vsel %vm131, %v36, %v102
  %v133 = vsel %vm131, %v34, %v104
  %v134 = vsel %vm131, %v25, %v106
  %v135 = vsel %vm131, %v41, %v108
  %v136 = vsel %vm131, %v47, %v110
  %v137 = vsel %vm131, %v52, %v112
  %v138 = vsel %vm131, %v53, %v114
  %v139 = vsel %vm131, %v58, %v116
  %v140 = vsel %vm131, %v59, %v118
  %v141 = vsel %vm131, 1.0, %v120
  %v142 = vld [vmem:[%s1] sm:$0xff]
  %v143 = vld [vmem:[%s1 + $0x8] sm:$0xff]
  %vm144 = vcmask 596992
  %v146 = vsel %vm144, %v142, 0
  %v149 = vsel %vm144, %v143, 0
  %vm151 = vcmask 1040384
  %v153 = vsel %vm151, %v141, 0
  %155 = vmatprep.subr.mxu0 0.0
  %156 = vmatpush1.msra.mxu0 %v132
  %157 = vmatprep.subr.mxu0 0.0
  %158 = vmatpush1.msra.mxu0 %v133
  %159 = vmatprep.subr.mxu0 0.0
  %160 = vmatpush1.msra.mxu0 %v134
  %161 = vmatprep.subr.mxu0 0.0
  %162 = vmatpush1.msra.mxu0 %v135
  %163 = vmatprep.subr.mxu0 0.0
  %164 = vmatpush1.msra.mxu0 %v136
  %165 = vmatprep.subr.mxu0 0.0
  %166 = vmatpush1.msra.mxu0 %v137
  %167 = vmatprep.subr.mxu0 0.0
  %168 = vmatpush1.msra.mxu0 %v138
  %169 = vmatprep.subr.mxu0 0.0
  %170 = vmatpush1.msra.mxu0 %v139
  %171 = vmatprep.subr.mxu0 0.0
  %172 = vmatpush1.msra.mxu0 %v140
  %173 = vmatprep.subr.mxu0 0.0
  %174 = vmatpush1.msra.mxu0 %v153
  %175 = vmatprep.subr.mxu0 0.0
  %176 = vmatpush1.msra.mxu0 0.0
  %177 = vmatprep.subr.mxu0 0.0
  %178 = vmatpush1.msra.mxu0 0.0
  %179 = vmatprep.subr.mxu0 0.0
  %180 = vmatpush1.msra.mxu0 0.0
  %181 = vmatprep.subr.mxu0 0.0
  %182 = vmatpush1.msra.mxu0 0.0
  %183 = vmatprep.subr.mxu0 0.0
  %184 = vmatpush1.msra.mxu0 0.0
  %185 = vmatprep.subr.mxu0 0.0
  %186 = vmatpush1.msra.mxu0 0.0
  %187 = vmatprep.subr.mxu0 0.0
  %188 = vmatpush1.msra.mxu0 0.0
  %189 = vmatprep.subr.mxu0 0.0
  %190 = vmatpush1.msra.mxu0 0.0
  %191 = vmatprep.subr.mxu0 0.0
  %192 = vmatpush1.msra.mxu0 0.0
  %193 = vmatprep.subr.mxu0 0.0
  %194 = vmatpush1.msra.mxu0 0.0
  %195 = vmatprep.subr.mxu0 0.0
  %196 = vmatpush1.msra.mxu0 0.0
  %197 = vmatprep.subr.mxu0 0.0
  %198 = vmatpush1.msra.mxu0 0.0
  %199 = vmatprep.subr.mxu0 0.0
  %200 = vmatpush1.msra.mxu0 0.0
  %201 = vmatprep.subr.mxu0 0.0
  %202 = vmatpush1.msra.mxu0 0.0
  %203 = vmatprep.subr.mxu0 0.0
  %204 = vmatpush1.msra.mxu0 0.0
  %205 = vmatprep.subr.mxu0 0.0
  %206 = vmatpush1.msra.mxu0 0.0
  %207 = vmatprep.subr.mxu0 0.0
  %208 = vmatpush1.msra.mxu0 0.0
  %209 = vmatprep.subr.mxu0 0.0
  %210 = vmatpush1.msra.mxu0 0.0
  %211 = vmatprep.subr.mxu0 0.0
  %212 = vmatpush1.msra.mxu0 0.0
  %213 = vmatprep.subr.mxu0 0.0
  %214 = vmatpush1.msra.mxu0 0.0
  %215 = vmatprep.subr.mxu0 0.0
  %216 = vmatpush1.msra.mxu0 0.0
  %217 = vmatprep.subr.mxu0 0.0
  %218 = vmatpush1.msra.mxu0 0.0
  %219 = vmatprep.mubr.f32.mxu0 0.0
  %220 = vmatmul.mubr.f32.gmra.mrb[0].mxu0 %v146
  %v221 = vpop.f32.mrb[0].mxu0
  %v222 = vadd.f32 0.0, %v221
  %v223 = vpop.f32.mrb[0].mxu0
  %224 = vmatprep.mubr.f32.mxu0 0.0
  %225 = vmatmul.mubr.f32.gmra.mrb[0].mxu0 %v149
  %v226 = vpop.f32.mrb[0].mxu0
  %v227 = vadd.f32 0.0, %v226
  %v228 = vpop.f32.mrb[0].mxu0
  %229 = vdwg.mxu0
  %230 = vst [vmem:[%s2] sm:$0xff] %v222
  %231 = vst [vmem:[%s2 + $0x8] sm:$0xff] %v227
  // Predicated region
  $region10: #{up_forward.1} parent=0 // pred_check
    _
  $region11: #{up_forward.1} parent=0 // pred_check_branch
    %233 = sbr.rel (0) target = $region13
  $region12: #{up_forward.1} parent=0 // pred_region
    _
  $region13: #{up_forward.1} parent=0 // pred_fallthru
    _
  // Predicated region
  $region14: #{up_forward.1} parent=0 // pred_check
    _
  $region15: #{up_forward.1} parent=0 // pred_check_branch
    %235 = sbr.rel (0) target = $region17
  $region16: #{up_forward.1} parent=0 // pred_region
    _
  $region17: #{up_forward.1} parent=0 // pred_fallthru
    _

</llo_original>
